<compile_context>
chip_gen: v7x
topology: tpu7x:2x2x1
jax: 0.10.0
libtpu: 0.0.40
codegen_flags: <defaults>
</compile_context>

<pallas_src>
import functools

import jax
import jax.numpy as jnp
from jax.experimental import pallas as pl
from jax.experimental.pallas import tpu as pltpu

_LN_EPS = 1e-5  # nn.LayerNorm default


def _round_up(x, m):
    return ((x + m - 1) // m) * m


def _gelu_tanh(h):
    # tanh-approx GELU: 0.5*h*(1+tanh(sqrt(2/pi)*(h+0.044715*h^3)))
    return 0.5 * h * (1.0 + jnp.tanh(0.7978845608028654 * (h + 0.044715 * h * h * h)))


def mlp_block_kernel(x_ref, g_ref, beta_ref, w1_ref, b1_ref, w2_ref, b2_ref, o_ref):
    # x_ref:    (TM, E)       row tile of tokens (f32)
    # g_ref:    (1, E)        LayerNorm gamma
    # beta_ref: (1, E)        LayerNorm beta
    # w1_ref:   (E, Hp)       Linear1 weight (transposed, bf16, lane-padded)
    # b1_ref:   (1, Hp)       Linear1 bias   (f32, lane-padded)
    # w2_ref:   (Hp, Ep)      Linear2 weight (transposed, bf16, lane-padded)
    # b2_ref:   (1, Ep)       Linear2 bias   (f32, lane-padded)
    # o_ref:    (TM, Ep)      output row tile (f32, lane-dense)
    x = x_ref[...].astype(jnp.float32)

    # LayerNorm over the embedding axis, in f32.
    mean = jnp.mean(x, axis=-1, keepdims=True)
    xc = x - mean
    var = jnp.mean(xc * xc, axis=-1, keepdims=True)
    xn = xc * jax.lax.rsqrt(var + _LN_EPS) * g_ref[...] + beta_ref[...]

    # Linear1 (E -> Hp) on the MXU in bf16, accumulate f32.
    h = jnp.dot(xn.astype(jnp.bfloat16), w1_ref[...],
                preferred_element_type=jnp.float32) + b1_ref[...]
    h = _gelu_tanh(h)

    # Linear2 (Hp -> Ep) on the MXU in bf16, accumulate f32. Single lane-dense store.
    out = jnp.dot(h.astype(jnp.bfloat16), w2_ref[...],
                  preferred_element_type=jnp.float32) + b2_ref[...]
    o_ref[...] = out.astype(o_ref.dtype)


def mlp_block_forward(x, gamma, beta, w1, b1, w2, b2, *, row_tile=256):
    """x: (B, N, E) f32.
    gamma/beta: (E,)   LayerNorm affine params.
    w1: (E, H)  = Linear1.weight.T ;  b1: (H,)
    w2: (H, E)  = Linear2.weight.T ;  b2: (E,)
    Returns (B, N, E) f32."""
    B, N, E = x.shape
    H = w1.shape[1]
    M = B * N

    # Lane-dense padding for the matmul result / output axes.
    Hp = _round_up(H, 128)
    Ep = _round_up(E, 128)

    # Row tiling over the fused B*N axis (feedback: 128 on v5e, 256 on v6e/v7x).
    TM = min(row_tile, _round_up(M, 8))
    Mp = _round_up(M, TM)

    x2 = x.reshape(M, E).astype(jnp.float32)
    if Mp != M:
        x2 = jnp.pad(x2, ((0, Mp - M), (0, 0)))

    w1p = jnp.pad(w1, ((0, 0), (0, Hp - H))).astype(jnp.bfloat16)
    b1p = jnp.pad(b1, (0, Hp - H)).reshape(1, Hp).astype(jnp.float32)
    w2p = jnp.pad(w2, ((0, Hp - H), (0, Ep - E))).astype(jnp.bfloat16)
    b2p = jnp.pad(b2, (0, Ep - E)).reshape(1, Ep).astype(jnp.float32)
    g2 = gamma.reshape(1, E).astype(jnp.float32)
    be2 = beta.reshape(1, E).astype(jnp.float32)

    grid = (Mp // TM,)
    out = pl.pallas_call(
        mlp_block_kernel,
        out_shape=jax.ShapeDtypeStruct((Mp, Ep), jnp.float32),
        grid_spec=pltpu.PrefetchScalarGridSpec(
            num_scalar_prefetch=0,
            grid=grid,
            in_specs=[
                pl.BlockSpec((TM, E), lambda i: (i, 0)),     # x row tile
                pl.BlockSpec((1, E), lambda i: (0, 0)),      # gamma (resident)
                pl.BlockSpec((1, E), lambda i: (0, 0)),      # beta  (resident)
                pl.BlockSpec((E, Hp), lambda i: (0, 0)),     # W1    (resident)
                pl.BlockSpec((1, Hp), lambda i: (0, 0)),     # b1    (resident)
                pl.BlockSpec((Hp, Ep), lambda i: (0, 0)),    # W2    (resident)
                pl.BlockSpec((1, Ep), lambda i: (0, 0)),     # b2    (resident)
            ],
            out_specs=pl.BlockSpec((TM, Ep), lambda i: (i, 0)),
        ),
        compiler_params=pltpu.CompilerParams(
            dimension_semantics=("parallel",)),
    )(x2, g2, be2, w1p, b1p, w2p, b2p)

    return out[:M, :E].reshape(B, N, E)


def _reference_forward(x, gamma, beta, w1, b1, w2, b2):
    """Pure-JAX reference with the same bf16 matmul casts as the kernel."""
    xf = x.astype(jnp.float32)
    mean = jnp.mean(xf, axis=-1, keepdims=True)
    xc = xf - mean
    var = jnp.mean(xc * xc, axis=-1, keepdims=True)
    xn = xc * jax.lax.rsqrt(var + _LN_EPS) * gamma + beta
    h = jnp.dot(xn.astype(jnp.bfloat16).astype(jnp.float32),
                w1.astype(jnp.bfloat16).astype(jnp.float32),
                precision="highest") + b1
    h = _gelu_tanh(h)
    out = jnp.dot(h.astype(jnp.bfloat16).astype(jnp.float32),
                  w2.astype(jnp.bfloat16).astype(jnp.float32),
                  precision="highest") + b2
    return out


if __name__ == "__main__":
    # Small shapes consistent with the module:
    #   embedding_dims = 32, mlp_size = 64, mlp_dropout = 0.1 (identity at eval)
    #   tokens: batch = 2, seq = 8
    B, N, E, Hsz = 2, 8, 32, 64

    key = jax.random.PRNGKey(0)
    kx, kg, kbeta, kw1, kb1, kw2, kb2 = jax.random.split(key, 7)

    x = jax.random.normal(kx, (B, N, E), dtype=jnp.float32)

    # LayerNorm params (PyTorch init: gamma=1, beta=0; perturb slightly).
    gamma = 1.0 + 0.05 * jax.random.normal(kg, (E,), dtype=jnp.float32)
    beta = 0.05 * jax.random.normal(kbeta, (E,), dtype=jnp.float32)

    # nn.Linear(E, H): weight (H, E) -> stored transposed (E, H). Same for Linear2.
    w1 = (jax.random.normal(kw1, (Hsz, E), dtype=jnp.float32) * 0.02).T  # (E, H)
    b1 = jax.random.normal(kb1, (Hsz,), dtype=jnp.float32) * 0.02
    w2 = (jax.random.normal(kw2, (E, Hsz), dtype=jnp.float32) * 0.02).T  # (H, E)
    b2 = jax.random.normal(kb2, (E,), dtype=jnp.float32) * 0.02

    out = mlp_block_forward(x, gamma, beta, w1, b1, w2, b2)
    out = jax.block_until_ready(out)

    ref = _reference_forward(x, gamma, beta, w1, b1, w2, b2)

    assert out.shape == (B, N, E)
    assert jnp.allclose(out, ref, atol=5e-3, rtol=5e-3), (
        float(jnp.max(jnp.abs(out - ref))))
    print("KERNEL_OK")
</pallas_src>

<mosaic_0001>
module attributes {stable_mosaic.version = 11 : i64} {
  func.func @mlp_block_kernel(%arg0: i32, %arg1: memref<16x32xf32, #tpu.memory_space<vmem>>, %arg2: memref<1x32xf32, #tpu.memory_space<vmem>>, %arg3: memref<1x32xf32, #tpu.memory_space<vmem>>, %arg4: memref<32x128xbf16, #tpu.memory_space<vmem>>, %arg5: memref<1x128xf32, #tpu.memory_space<vmem>>, %arg6: memref<128x128xbf16, #tpu.memory_space<vmem>>, %arg7: memref<1x128xf32, #tpu.memory_space<vmem>>, %arg8: memref<16x128xf32, #tpu.memory_space<vmem>>) attributes {dimension_semantics = [#tpu.dimension_semantics<parallel>], iteration_bounds = array<i64: 1>, scalar_prefetch = 0 : i64, scratch_operands = 0 : i64, tpu.core_type = #tpu.core_type<tc>, window_params = [{transform_indices = @transform_0, window_bounds = array<i64: 16, 32>}, {pipeline_mode = #tpu.pipeline_mode<synchronous>, transform_indices = @transform_1, window_bounds = array<i64: 1, 32>}, {pipeline_mode = #tpu.pipeline_mode<synchronous>, transform_indices = @transform_2, window_bounds = array<i64: 1, 32>}, {pipeline_mode = #tpu.pipeline_mode<synchronous>, transform_indices = @transform_3, window_bounds = array<i64: 32, 128>}, {pipeline_mode = #tpu.pipeline_mode<synchronous>, transform_indices = @transform_4, window_bounds = array<i64: 1, 128>}, {pipeline_mode = #tpu.pipeline_mode<synchronous>, transform_indices = @transform_5, window_bounds = array<i64: 128, 128>}, {pipeline_mode = #tpu.pipeline_mode<synchronous>, transform_indices = @transform_6, window_bounds = array<i64: 1, 128>}, {transform_indices = @transform_7, window_bounds = array<i64: 16, 128>}]} {
    %c0 = arith.constant 0 : index
    %c0_0 = arith.constant 0 : index
    %0 = vector.load %arg1[%c0, %c0_0] : memref<16x32xf32, #tpu.memory_space<vmem>>, vector<16x32xf32>
    %cst = arith.constant dense<0.000000e+00> : vector<16xf32>
    %1 = vector.multi_reduction <add>, %0, %cst [1] : vector<16x32xf32> to vector<16xf32>
    %2 = vector.shape_cast %1 : vector<16xf32> to vector<16x1xf32>
    %cst_1 = arith.constant 3.200000e+01 : f32
    %3 = vector.broadcast %cst_1 : f32 to vector<16x1xf32>
    %4 = arith.divf %2, %3 : vector<16x1xf32>
    %5 = vector.broadcast %4 : vector<16x1xf32> to vector<16x32xf32>
    %6 = arith.subf %0, %5 : vector<16x32xf32>
    %7 = arith.mulf %6, %6 : vector<16x32xf32>
    %cst_2 = arith.constant dense<0.000000e+00> : vector<16xf32>
    %8 = vector.multi_reduction <add>, %7, %cst_2 [1] : vector<16x32xf32> to vector<16xf32>
    %9 = vector.shape_cast %8 : vector<16xf32> to vector<16x1xf32>
    %cst_3 = arith.constant 3.200000e+01 : f32
    %10 = vector.broadcast %cst_3 : f32 to vector<16x1xf32>
    %11 = arith.divf %9, %10 : vector<16x1xf32>
    %cst_4 = arith.constant 9.99999974E-6 : f32
    %12 = vector.broadcast %cst_4 : f32 to vector<16x1xf32>
    %13 = arith.addf %11, %12 : vector<16x1xf32>
    %14 = math.rsqrt %13 : vector<16x1xf32>
    %15 = vector.broadcast %14 : vector<16x1xf32> to vector<16x32xf32>
    %16 = arith.mulf %6, %15 : vector<16x32xf32>
    %c0_5 = arith.constant 0 : index
    %c0_6 = arith.constant 0 : index
    %17 = vector.load %arg2[%c0_5, %c0_6] : memref<1x32xf32, #tpu.memory_space<vmem>>, vector<1x32xf32>
    %18 = vector.broadcast %17 : vector<1x32xf32> to vector<16x32xf32>
    %19 = arith.mulf %16, %18 : vector<16x32xf32>
    %c0_7 = arith.constant 0 : index
    %c0_8 = arith.constant 0 : index
    %20 = vector.load %arg3[%c0_7, %c0_8] : memref<1x32xf32, #tpu.memory_space<vmem>>, vector<1x32xf32>
    %21 = vector.broadcast %20 : vector<1x32xf32> to vector<16x32xf32>
    %22 = arith.addf %19, %21 : vector<16x32xf32>
    %23 = arith.truncf %22 : vector<16x32xf32> to vector<16x32xbf16>
    %c0_9 = arith.constant 0 : index
    %c0_10 = arith.constant 0 : index
    %24 = vector.load %arg4[%c0_9, %c0_10] : memref<32x128xbf16, #tpu.memory_space<vmem>>, vector<32x128xbf16>
    %cst_11 = arith.constant dense<0.000000e+00> : vector<16x128xf32>
    %25 = tpu.matmul %23, %24, %cst_11 {dimension_numbers = #tpu.dot_dimension_numbers<[1], [0], [0], [1], [0, 0, 1, 1], [], []>} : vector<16x32xbf16>, vector<32x128xbf16>, vector<16x128xf32> -> vector<16x128xf32>
    %c0_12 = arith.constant 0 : index
    %c0_13 = arith.constant 0 : index
    %26 = vector.load %arg5[%c0_12, %c0_13] : memref<1x128xf32, #tpu.memory_space<vmem>>, vector<1x128xf32>
    %27 = vector.broadcast %26 : vector<1x128xf32> to vector<16x128xf32>
    %28 = arith.addf %25, %27 : vector<16x128xf32>
    %cst_14 = arith.constant 5.000000e-01 : f32
    %29 = vector.broadcast %cst_14 : f32 to vector<16x128xf32>
    %30 = arith.mulf %29, %28 : vector<16x128xf32>
    %cst_15 = arith.constant 4.471500e-02 : f32
    %31 = vector.broadcast %cst_15 : f32 to vector<16x128xf32>
    %32 = arith.mulf %31, %28 : vector<16x128xf32>
    %33 = arith.mulf %32, %28 : vector<16x128xf32>
    %34 = arith.mulf %33, %28 : vector<16x128xf32>
    %35 = arith.addf %28, %34 : vector<16x128xf32>
    %cst_16 = arith.constant 0.797884583 : f32
    %36 = vector.broadcast %cst_16 : f32 to vector<16x128xf32>
    %37 = arith.mulf %36, %35 : vector<16x128xf32>
    %38 = math.tanh %37 : vector<16x128xf32>
    %cst_17 = arith.constant 1.000000e+00 : f32
    %39 = vector.broadcast %cst_17 : f32 to vector<16x128xf32>
    %40 = arith.addf %39, %38 : vector<16x128xf32>
    %41 = arith.mulf %30, %40 : vector<16x128xf32>
    %42 = arith.truncf %41 : vector<16x128xf32> to vector<16x128xbf16>
    %c0_18 = arith.constant 0 : index
    %c0_19 = arith.constant 0 : index
    %43 = vector.load %arg6[%c0_18, %c0_19] : memref<128x128xbf16, #tpu.memory_space<vmem>>, vector<128x128xbf16>
    %cst_20 = arith.constant dense<0.000000e+00> : vector<16x128xf32>
    %44 = tpu.matmul %42, %43, %cst_20 {dimension_numbers = #tpu.dot_dimension_numbers<[1], [0], [0], [1], [0, 0, 1, 1], [], []>} : vector<16x128xbf16>, vector<128x128xbf16>, vector<16x128xf32> -> vector<16x128xf32>
    %c0_21 = arith.constant 0 : index
    %c0_22 = arith.constant 0 : index
    %45 = vector.load %arg7[%c0_21, %c0_22] : memref<1x128xf32, #tpu.memory_space<vmem>>, vector<1x128xf32>
    %46 = vector.broadcast %45 : vector<1x128xf32> to vector<16x128xf32>
    %47 = arith.addf %44, %46 : vector<16x128xf32>
    %c0_23 = arith.constant 0 : index
    %c0_24 = arith.constant 0 : index
    %48 = vector.load %arg8[%c0_23, %c0_24] : memref<16x128xf32, #tpu.memory_space<vmem>>, vector<16x128xf32>
    tpu.vector_store %arg8[%c0_23, %c0_24], %47 {strides = array<i32>} : memref<16x128xf32, #tpu.memory_space<vmem>>, vector<16x128xf32>,
    return
  }
  func.func @transform_0(%arg0: i32) -> (i32, i32) {
    %c0_i32 = arith.constant 0 : i32
    %c0_i32_0 = arith.constant 0 : i32
    return %arg0, %c0_i32 : i32, i32
  }
  func.func @transform_1(%arg0: i32) -> (i32, i32) {
    %c0_i32 = arith.constant 0 : i32
    %c0_i32_0 = arith.constant 0 : i32
    %c0_i32_1 = arith.constant 0 : i32
    return %c0_i32, %c0_i32_0 : i32, i32
  }
  func.func @transform_2(%arg0: i32) -> (i32, i32) {
    %c0_i32 = arith.constant 0 : i32
    %c0_i32_0 = arith.constant 0 : i32
    %c0_i32_1 = arith.constant 0 : i32
    return %c0_i32, %c0_i32_0 : i32, i32
  }
  func.func @transform_3(%arg0: i32) -> (i32, i32) {
    %c0_i32 = arith.constant 0 : i32
    %c0_i32_0 = arith.constant 0 : i32
    %c0_i32_1 = arith.constant 0 : i32
    return %c0_i32, %c0_i32_0 : i32, i32
  }
  func.func @transform_4(%arg0: i32) -> (i32, i32) {
    %c0_i32 = arith.constant 0 : i32
    %c0_i32_0 = arith.constant 0 : i32
    %c0_i32_1 = arith.constant 0 : i32
    return %c0_i32, %c0_i32_0 : i32, i32
  }
  func.func @transform_5(%arg0: i32) -> (i32, i32) {
    %c0_i32 = arith.constant 0 : i32
    %c0_i32_0 = arith.constant 0 : i32
    %c0_i32_1 = arith.constant 0 : i32
    return %c0_i32, %c0_i32_0 : i32, i32
  }
  func.func @transform_6(%arg0: i32) -> (i32, i32) {
    %c0_i32 = arith.constant 0 : i32
    %c0_i32_0 = arith.constant 0 : i32
    %c0_i32_1 = arith.constant 0 : i32
    return %c0_i32, %c0_i32_0 : i32, i32
  }
  func.func @transform_7(%arg0: i32) -> (i32, i32) {
    %c0_i32 = arith.constant 0 : i32
    %c0_i32_0 = arith.constant 0 : i32
    return %arg0, %c0_i32 : i32, i32
  }
}

</mosaic_0001>

<llo_original>
// kernel: tpu_custom_call.1
$region0: #{tpu_custom_call.1}
  #allocation0 [shape = 'u32[]', space=smem, size = 0x4, offset = 0x4, fixed_abs, tag = 'smem constant byte address 0x4 - core index']
  #allocation1 [shape = 'u32[144,128]{1,0:T(1,128)}', space=vmem, size = 0x12000, scoped, tag = 'internal scratch']
  %s0 = inlined_call_operand.hbm [shape: f32[16,32], index: 0, kind: input, shape index: {}]
  %s1 = inlined_call_operand.vmem [shape: f32[1,32], index: 1, kind: input, shape index: {}]
  %s2 = inlined_call_operand.vmem [shape: f32[1,32], index: 2, kind: input, shape index: {}]
  %s3 = inlined_call_operand.hbm [shape: bf16[32,128], index: 3, kind: input, shape index: {}]
  %s4 = inlined_call_operand.vmem [shape: f32[1,128], index: 4, kind: input, shape index: {}]
  %s5 = inlined_call_operand.hbm [shape: bf16[128,128], index: 5, kind: input, shape index: {}]
  %s6 = inlined_call_operand.vmem [shape: f32[1,128], index: 6, kind: input, shape index: {}]
  %s7 = inlined_call_operand.hbm [shape: f32[16,128], index: 7, kind: output, shape index: {}]
  %s8 = sld [smem:[#allocation0]]
  $region50: #{tpu_custom_call.1} parent=0
    _
  %s10 = ssub.s32 1, %s8
  %s11 = scalar_select 0, %s10, %s8
  $region1: #{tpu_custom_call.1} parent=0
    #allocation2 [shape = 'u8[8192]{0}', space=vmem, size = 0x2000, scoped, tag = 'input window, operand 0, single buffered']
    #allocation3 [shape = 's32[1]{0}', space=sflag, size = 0x4, scoped, tag = 'scoped memory for tpu_custom_call.1']
    #allocation4 [shape = 's32[1]{0}', space=sflag, size = 0x4, scoped, tag = 'scoped memory for tpu_custom_call.1']
    #allocation5 [shape = 'u8[8192]{0}', space=vmem, size = 0x2000, scoped, tag = 'input window, operand 3, single buffered']
    #allocation6 [shape = 's32[1]{0}', space=sflag, size = 0x4, scoped, tag = 'scoped memory for tpu_custom_call.1']
    #allocation7 [shape = 'u8[32768]{0}', space=vmem, size = 0x8000, scoped, tag = 'input window, operand 5, single buffered']
    #allocation8 [shape = 'u8[8192]{0}', space=vmem, size = 0x2000, scoped, tag = 'output window, operand 0, single buffered']
    %12 = vsyncpa [#allocation3], 0
    %13 = vsyncpa [#allocation6], 0
    %14 = vsyncpa [#allocation4], 0
    // Predicated region
    $region2: #{tpu_custom_call.1} parent=1 // pred_check
      _
    $region3: #{tpu_custom_call.1} parent=1 // pred_check_branch
      %16 = sbr.rel (0) target = $region5
    $region4: #{tpu_custom_call.1} parent=1 // pred_region
      %s18 = ssub.s32 256, 256
      %19 = vsyncadd [#allocation3], %s18
      %s20 = sshll.u32 [#allocation2], 4
      %s21 = int_to_ptr.vmem [resolvable:$true] %s20
      %26 = dma.hbm_to_vmem [thread:$0]  %s0, 256, %s21, [#allocation3], 128, 128, 8
    $region5: #{tpu_custom_call.1} parent=1 // pred_fallthru
      _
    // Predicated region
    $region6: #{tpu_custom_call.1} parent=1 // pred_check
      _
    $region7: #{tpu_custom_call.1} parent=1 // pred_check_branch
      %28 = sbr.rel (0) target = $region9
    $region8: #{tpu_custom_call.1} parent=1 // pred_region
      _
    $region9: #{tpu_custom_call.1} parent=1 // pred_fallthru
      _
    // Predicated region
    $region10: #{tpu_custom_call.1} parent=1 // pred_check
      _
    $region11: #{tpu_custom_call.1} parent=1 // pred_check_branch
      %30 = sbr.rel (0) target = $region13
    $region12: #{tpu_custom_call.1} parent=1 // pred_region
      _
    $region13: #{tpu_custom_call.1} parent=1 // pred_fallthru
      _
    // Predicated region
    $region14: #{tpu_custom_call.1} parent=1 // pred_check
      _
    $region15: #{tpu_custom_call.1} parent=1 // pred_check_branch
      %32 = sbr.rel (0) target = $region17
    $region16: #{tpu_custom_call.1} parent=1 // pred_region
      %s34 = ssub.s32 256, 256
      %35 = vsyncadd [#allocation6], %s34
      %s36 = sshll.u32 [#allocation5], 4
      %s37 = int_to_ptr.vmem [resolvable:$true] %s36
      %42 = dma.hbm_to_vmem [thread:$0]  %s3, 256, %s37, [#allocation6], 64, 64, 4
    $region17: #{tpu_custom_call.1} parent=1 // pred_fallthru
      _
    // Predicated region
    $region18: #{tpu_custom_call.1} parent=1 // pred_check
      _
    $region19: #{tpu_custom_call.1} parent=1 // pred_check_branch
      %44 = sbr.rel (0) target = $region21
    $region20: #{tpu_custom_call.1} parent=1 // pred_region
      _
    $region21: #{tpu_custom_call.1} parent=1 // pred_fallthru
      _
    // Predicated region
    $region22: #{tpu_custom_call.1} parent=1 // pred_check
      _
    $region23: #{tpu_custom_call.1} parent=1 // pred_check_branch
      %46 = sbr.rel (0) target = $region25
    $region24: #{tpu_custom_call.1} parent=1 // pred_region
      %s48 = ssub.s32 1024, 1024
      %49 = vsyncadd [#allocation6], %s48
      %s50 = sshll.u32 [#allocation7], 4
      %s51 = int_to_ptr.vmem [resolvable:$true] %s50
      %56 = dma.hbm_to_vmem [thread:$0]  %s5, 1024, %s51, [#allocation6], 64, 64, 4
    $region25: #{tpu_custom_call.1} parent=1 // pred_fallthru
      _
    // Predicated region
    $region26: #{tpu_custom_call.1} parent=1 // pred_check
      _
    $region27: #{tpu_custom_call.1} parent=1 // pred_check_branch
      %58 = sbr.rel (0) target = $region29
    $region28: #{tpu_custom_call.1} parent=1 // pred_region
      _
    $region29: #{tpu_custom_call.1} parent=1 // pred_fallthru
      _
    // Predicated region
    $region30: #{tpu_custom_call.1} parent=1 // pred_check
      _
    $region31: #{tpu_custom_call.1} parent=1 // pred_check_branch
      %60 = sbr.rel (0) target = $region33
    $region32: #{tpu_custom_call.1} parent=1 // pred_region
      %61 = dma.done [#allocation3], 256
    $region33: #{tpu_custom_call.1} parent=1 // pred_fallthru
      _
    // Predicated region
    $region34: #{tpu_custom_call.1} parent=1 // pred_check
      _
    $region35: #{tpu_custom_call.1} parent=1 // pred_check_branch
      %63 = sbr.rel (0) target = $region37
    $region36: #{tpu_custom_call.1} parent=1 // pred_region
      %64 = dma.done [#allocation6], 256
    $region37: #{tpu_custom_call.1} parent=1 // pred_fallthru
      _
    // Predicated region
    $region38: #{tpu_custom_call.1} parent=1 // pred_check
      _
    $region39: #{tpu_custom_call.1} parent=1 // pred_check_branch
      %66 = sbr.rel (0) target = $region41
    $region40: #{tpu_custom_call.1} parent=1 // pred_region
      %67 = dma.done [#allocation6], 1024
    $region41: #{tpu_custom_call.1} parent=1 // pred_fallthru
      _
    %v69 = vld [vmem:[#allocation2] sm:$0xff]
    %v70 = vld [vmem:[#allocation2 + $0x8] sm:$0xff]
    %vm71 = vcmask 261120
    %v72 = vsel %vm71, %v69, 0.0
    %73 = vadd.xlane.f32.xlu0 %v72
    %v74 = vpop.xlane.xlu0 %73
    %v75 = vsel %vm71, %v70, 0.0
    %76 = vadd.xlane.f32.xlu0 %v75
    %v77 = vpop.xlane.xlu0 %76
    %v78 = vrcp.pop 32.0
    %v79 = vmul.f32 %v74, %v78
    %v80 = vmul.f32 %v77, %v78
    %v81 = vsub.f32 %v69, %v79
    %v82 = vsub.f32 %v70, %v80
    %v83 = vmul.f32 %v81, %v81
    %v84 = vmul.f32 %v82, %v82
    %v85 = vsel %vm71, %v83, 0.0
    %86 = vadd.xlane.f32.xlu0 %v85
    %v87 = vpop.xlane.xlu0 %86
    %v88 = vsel %vm71, %v84, 0.0
    %89 = vadd.xlane.f32.xlu0 %v88
    %v90 = vpop.xlane.xlu0 %89
    %v91 = vmul.f32 %v87, %v78
    %v92 = vmul.f32 %v90, %v78
    %v93 = vadd.f32 %v91, 1e-05
    %v94 = vadd.f32 %v92, 1e-05
    %v95 = vrsqrt.pop %v93
    %v96 = vrsqrt.pop %v94
    %v97 = vmul.f32 %v81, %v95
    %v98 = vmul.f32 %v82, %v96
    %v99 = vld [vmem:[%s1] sm:$0x1]
    %v101 = vlaneseq
    %v102 = vshrl.u32 %v101, 7
    %v103 = vsub.s32 0, %v102
    %v104 = vrot.slane %v99, %v103
    %v106 = vmul.f32 %v97, %v104
    %v107 = vmul.f32 %v98, %v104
    %v108 = vld [vmem:[%s2] sm:$0x1]
    %v110 = vlaneseq
    %v111 = vshrl.u32 %v110, 7
    %v112 = vsub.s32 0, %v111
    %v113 = vrot.slane %v108, %v112
    %v115 = vadd.f32 %v106, %v113
    %v116 = vadd.f32 %v107, %v113
    %v117 = vpack.c.bf16 %v116, %v115
    %v118 = vld [vmem:[#allocation5] sm:$0xf]
    %v119 = vld [vmem:[#allocation5 + $0x4] sm:$0xf]
    %v120 = vld [vmem:[#allocation5 + $0x8] sm:$0xf]
    %v121 = vld [vmem:[#allocation5 + $0xc] sm:$0xf]
    %v122 = vld [vmem:[%s4] sm:$0x1]
    %v124 = vlaneseq
    %v125 = vshrl.u32 %v124, 7
    %v126 = vsub.s32 0, %v125
    %v127 = vrot.slane %v122, %v126
    %v133 = vunpack.c.l.b16 %v118
    %v134 = vunpack.c.l.b16 %v119
    %v135 = vunpack.c.l.b16 %v120
    %v136 = vunpack.c.l.b16 %v121
    %v137 = vpack.c.b16 %v134, %v133
    %v138 = vpack.c.b16 %v136, %v135
    %v142 = vsel %vm71, %v117, 0
    %144 = vmatprep.subr.bf16.mxu0 0
    %145 = vmatpush1.bf16.msra.mxu0 %v137
    %146 = vmatprep.subr.bf16.mxu0 0
    %147 = vmatpush1.bf16.msra.mxu0 %v138
    %148 = vmatprep.subr.bf16.mxu0 0
    %149 = vmatpush1.bf16.msra.mxu0 0
    %150 = vmatprep.subr.bf16.mxu0 0
    %151 = vmatpush1.bf16.msra.mxu0 0
    %152 = vmatprep.subr.bf16.mxu0 0
    %153 = vmatpush1.bf16.msra.mxu0 0
    %154 = vmatprep.subr.bf16.mxu0 0
    %155 = vmatpush1.bf16.msra.mxu0 0
    %156 = vmatprep.subr.bf16.mxu0 0
    %157 = vmatpush1.bf16.msra.mxu0 0
    %158 = vmatprep.subr.bf16.mxu0 0
    %159 = vmatpush1.bf16.msra.mxu0 0
    %160 = vmatprep.subr.bf16.mxu0 0
    %161 = vmatpush1.bf16.msra.mxu0 0
    %162 = vmatprep.subr.bf16.mxu0 0
    %163 = vmatpush1.bf16.msra.mxu0 0
    %164 = vmatprep.subr.bf16.mxu0 0
    %165 = vmatpush1.bf16.msra.mxu0 0
    %166 = vmatprep.subr.bf16.mxu0 0
    %167 = vmatpush1.bf16.msra.mxu0 0
    %168 = vmatprep.subr.bf16.mxu0 0
    %169 = vmatpush1.bf16.msra.mxu0 0
    %170 = vmatprep.subr.bf16.mxu0 0
    %171 = vmatpush1.bf16.msra.mxu0 0
    %172 = vmatprep.subr.bf16.mxu0 0
    %173 = vmatpush1.bf16.msra.mxu0 0
    %174 = vmatprep.subr.bf16.mxu0 0
    %175 = vmatpush1.bf16.msra.mxu0 0
    %176 = vmatprep.mubr.bf16.mxu0 0
    %177 = vmatmul.mubr.bf16.gmra.mrb[0].mxu0 %v142
    %v178 = vpop.f32.mrb[0].mxu0
    %v179 = vadd.f32 %v127, %v178
    %v180 = vpop.f32.mrb[0].mxu0
    %v181 = vpop.f32.mrb[0].mxu0
    %v182 = vadd.f32 %v127, %v181
    %v183 = vpop.f32.mrb[0].mxu0
    %184 = vdwg.mxu0
    %v185 = vmul.f32 %v179, 0.5
    %v186 = vmul.f32 %v182, 0.5
    %v187 = vmul.f32 %v179, 0.044715
    %v188 = vmul.f32 %v182, 0.044715
    %v189 = vmul.f32 %v187, %v179
    %v190 = vmul.f32 %v188, %v182
    %v191 = vmul.f32 %v189, %v179
    %v192 = vmul.f32 %v190, %v182
    %v193 = vadd.f32 %v179, %v191
    %v194 = vadd.f32 %v182, %v192
    %v195 = vmul.f32 %v193, 0.7978846
    %v196 = vmul.f32 %v194, 0.7978846
    %v197 = vtanh.pop %v195
    %v198 = vtanh.pop %v196
    %v199 = vadd.f32 %v197, 1.0
    %v200 = vadd.f32 %v198, 1.0
    %v201 = vmul.f32 %v185, %v199
    %v202 = vmul.f32 %v186, %v200
    %v203 = vpack.c.bf16 %v202, %v201
    %v204 = vld [vmem:[#allocation7] sm:$0xf]
    %v205 = vld [vmem:[#allocation7 + $0x4] sm:$0xf]
    %v206 = vld [vmem:[#allocation7 + $0x8] sm:$0xf]
    %v207 = vld [vmem:[#allocation7 + $0xc] sm:$0xf]
    %v208 = vld [vmem:[#allocation7 + $0x10] sm:$0xf]
    %v209 = vld [vmem:[#allocation7 + $0x14] sm:$0xf]
    %v210 = vld [vmem:[#allocation7 + $0x18] sm:$0xf]
    %v211 = vld [vmem:[#allocation7 + $0x1c] sm:$0xf]
    %v212 = vld [vmem:[#allocation7 + $0x20] sm:$0xf]
    %v213 = vld [vmem:[#allocation7 + $0x24] sm:$0xf]
    %v214 = vld [vmem:[#allocation7 + $0x28] sm:$0xf]
    %v215 = vld [vmem:[#allocation7 + $0x2c] sm:$0xf]
    %v216 = vld [vmem:[#allocation7 + $0x30] sm:$0xf]
    %v217 = vld [vmem:[#allocation7 + $0x34] sm:$0xf]
    %v218 = vld [vmem:[#allocation7 + $0x38] sm:$0xf]
    %v219 = vld [vmem:[#allocation7 + $0x3c] sm:$0xf]
    %v220 = vld [vmem:[%s6] sm:$0x1]
    %v222 = vlaneseq
    %v223 = vshrl.u32 %v222, 7
    %v224 = vsub.s32 0, %v223
    %v225 = vrot.slane %v220, %v224
    %v243 = vunpack.c.l.b16 %v204
    %v244 = vunpack.c.l.b16 %v205
    %v245 = vunpack.c.l.b16 %v206
    %v246 = vunpack.c.l.b16 %v207
    %v247 = vunpack.c.l.b16 %v208
    %v248 = vunpack.c.l.b16 %v209
    %v249 = vunpack.c.l.b16 %v210
    %v250 = vunpack.c.l.b16 %v211
    %v251 = vunpack.c.l.b16 %v212
    %v252 = vunpack.c.l.b16 %v213
    %v253 = vunpack.c.l.b16 %v214
    %v254 = vunpack.c.l.b16 %v215
    %v255 = vunpack.c.l.b16 %v216
    %v256 = vunpack.c.l.b16 %v217
    %v257 = vunpack.c.l.b16 %v218
    %v258 = vunpack.c.l.b16 %v219
    %v259 = vpack.c.b16 %v244, %v243
    %v260 = vpack.c.b16 %v246, %v245
    %v261 = vpack.c.b16 %v248, %v247
    %v262 = vpack.c.b16 %v250, %v249
    %v263 = vpack.c.b16 %v252, %v251
    %v264 = vpack.c.b16 %v254, %v253
    %v265 = vpack.c.b16 %v256, %v255
    %v266 = vpack.c.b16 %v258, %v257
    %275 = vmatprep.subr.bf16.mxu0 0
    %276 = vmatpush1.bf16.msra.mxu0 %v259
    %277 = vmatprep.subr.bf16.mxu0 0
    %278 = vmatpush1.bf16.msra.mxu0 %v260
    %279 = vmatprep.subr.bf16.mxu0 0
    %280 = vmatpush1.bf16.msra.mxu0 %v261
    %281 = vmatprep.subr.bf16.mxu0 0
    %282 = vmatpush1.bf16.msra.mxu0 %v262
    %283 = vmatprep.subr.bf16.mxu0 0
    %284 = vmatpush1.bf16.msra.mxu0 %v263
    %285 = vmatprep.subr.bf16.mxu0 0
    %286 = vmatpush1.bf16.msra.mxu0 %v264
    %287 = vmatprep.subr.bf16.mxu0 0
    %288 = vmatpush1.bf16.msra.mxu0 %v265
    %289 = vmatprep.subr.bf16.mxu0 0
    %290 = vmatpush1.bf16.msra.mxu0 %v266
    %291 = vmatprep.subr.bf16.mxu0 0
    %292 = vmatpush1.bf16.msra.mxu0 0
    %293 = vmatprep.subr.bf16.mxu0 0
    %294 = vmatpush1.bf16.msra.mxu0 0
    %295 = vmatprep.subr.bf16.mxu0 0
    %296 = vmatpush1.bf16.msra.mxu0 0
    %297 = vmatprep.subr.bf16.mxu0 0
    %298 = vmatpush1.bf16.msra.mxu0 0
    %299 = vmatprep.subr.bf16.mxu0 0
    %300 = vmatpush1.bf16.msra.mxu0 0
    %301 = vmatprep.subr.bf16.mxu0 0
    %302 = vmatpush1.bf16.msra.mxu0 0
    %303 = vmatprep.subr.bf16.mxu0 0
    %304 = vmatpush1.bf16.msra.mxu0 0
    %305 = vmatprep.subr.bf16.mxu0 0
    %306 = vmatpush1.bf16.msra.mxu0 0
    %307 = vmatprep.mubr.bf16.mxu0 0
    %308 = vmatmul.mubr.bf16.gmra.mrb[0].mxu0 %v203
    %v309 = vpop.f32.mrb[0].mxu0
    %v310 = vadd.f32 %v225, %v309
    %v311 = vpop.f32.mrb[0].mxu0
    %v312 = vpop.f32.mrb[0].mxu0
    %v313 = vadd.f32 %v225, %v312
    %v314 = vpop.f32.mrb[0].mxu0
    %315 = vdwg.mxu0
    %316 = vst [vmem:[#allocation8] sm:$0xff] %v310
    %317 = vst [vmem:[#allocation8 + $0x8] sm:$0xff] %v313
    // Predicated region
    $region42: #{tpu_custom_call.1} parent=1 // pred_check
      _
    $region43: #{tpu_custom_call.1} parent=1 // pred_check_branch
      %319 = sbr.rel (0) target = $region45
    $region44: #{tpu_custom_call.1} parent=1 // pred_region
      %s321 = ssub.s32 256, 256
      %322 = vsyncadd [#allocation4], %s321
      %s323 = sshll.u32 [#allocation8], 4
      %s324 = int_to_ptr.vmem [resolvable:$true] %s323
      %329 = dma.vmem_to_hbm [thread:$0]  %s324, 256, %s7, [#allocation4], 128, 128, 8
    $region45: #{tpu_custom_call.1} parent=1 // pred_fallthru
      _
    // Predicated region
    $region46: #{tpu_custom_call.1} parent=1 // pred_check
      _
    $region47: #{tpu_custom_call.1} parent=1 // pred_check_branch
      %331 = sbr.rel (0) target = $region49
    $region48: #{tpu_custom_call.1} parent=1 // pred_region
      %332 = dma.done [#allocation4], 256
    $region49: #{tpu_custom_call.1} parent=1 // pred_fallthru
      _
    %333 = vsyncpa [#allocation3], 1
    %334 = vsyncpa [#allocation6], 1
    %335 = vsyncpa [#allocation4], 1

</llo_original>
